<compile_context>
chip_gen: v7x
topology: tpu7x:2x2x1
jax: 0.10.0
libtpu: 0.0.40
codegen_flags: <defaults>
</compile_context>

<pallas_src>
import math

import jax
import jax.numpy as jnp
from jax import lax
from jax.experimental import pallas as pl
from jax.experimental.pallas import tpu as pltpu


_GELU_C = math.sqrt(2.0 / math.pi)
_LN_EPS = 1e-12


def _gelu_layernorm_f32(h, gamma, beta):
    """tanh-GELU + TF-style LayerNorm (eps inside the sqrt), all in f32.

    h: (tm, H) f32; gamma/beta: (1, H) f32.
    """
    # Factored GELU polynomial: tanh(c*(h + 0.044715*h^3)) == tanh(h*(c + c*0.044715*h*h))
    inner = h * (_GELU_C + (_GELU_C * 0.044715) * (h * h))
    h = 0.5 * h * (1.0 + jnp.tanh(inner))
    # Two-pass (centered) variance: bit-matches the reference formula.
    u = jnp.mean(h, axis=-1, keepdims=True)
    d = h - u
    s = jnp.mean(d * d, axis=-1, keepdims=True)
    y = d * lax.rsqrt(s + _LN_EPS)
    return gamma * y + beta


def _transform_kernel(x_ref, wt_ref, b_ref, g_ref, bt_ref, o_ref):
    # x: (tm, K); wt: (K, N) pre-transposed in the wrapper -> plain MXU
    # contraction in the operands' native dtype, f32 accumulation.
    h = jnp.dot(x_ref[...], wt_ref[...], preferred_element_type=jnp.float32)
    h = h + b_ref[...].astype(jnp.float32)
    y = _gelu_layernorm_f32(h, g_ref[...].astype(jnp.float32),
                            bt_ref[...].astype(jnp.float32))
    o_ref[...] = y.astype(o_ref.dtype)


def _transform_ktiled_kernel(x_ref, wt_ref, b_ref, g_ref, bt_ref, o_ref, acc_ref):
    k = pl.program_id(1)

    @pl.when(k == 0)
    def _():
        acc_ref[...] = jnp.zeros_like(acc_ref)

    acc_ref[...] += jnp.dot(x_ref[...], wt_ref[...],
                            preferred_element_type=jnp.float32)

    @pl.when(k == pl.num_programs(1) - 1)
    def _():
        h = acc_ref[...] + b_ref[...].astype(jnp.float32)
        y = _gelu_layernorm_f32(h, g_ref[...].astype(jnp.float32),
                                bt_ref[...].astype(jnp.float32))
        o_ref[...] = y.astype(o_ref.dtype)


def _build_single_pass(M, H, tm, out_dtype, vmem_limit, cost):
    return pl.pallas_call(
        _transform_kernel,
        out_shape=jax.ShapeDtypeStruct((M, H), out_dtype),
        grid_spec=pltpu.PrefetchScalarGridSpec(
            num_scalar_prefetch=0,
            grid=(pl.cdiv(M, tm),),
            in_specs=[
                pl.BlockSpec((tm, H), lambda i: (i, 0)),
                pl.BlockSpec((H, H), lambda i: (0, 0)),
                pl.BlockSpec((1, H), lambda i: (0, 0)),
                pl.BlockSpec((1, H), lambda i: (0, 0)),
                pl.BlockSpec((1, H), lambda i: (0, 0)),
            ],
            out_specs=pl.BlockSpec((tm, H), lambda i: (i, 0)),
        ),
        compiler_params=pltpu.CompilerParams(
            dimension_semantics=("parallel",),
            vmem_limit_bytes=vmem_limit,
        ),
        cost_estimate=cost,
    )


def _build_k_tiled(M, H, tm, tk, out_dtype, vmem_limit, cost):
    return pl.pallas_call(
        _transform_ktiled_kernel,
        out_shape=jax.ShapeDtypeStruct((M, H), out_dtype),
        grid_spec=pltpu.PrefetchScalarGridSpec(
            num_scalar_prefetch=0,
            grid=(pl.cdiv(M, tm), H // tk),
            in_specs=[
                pl.BlockSpec((tm, tk), lambda i, k: (i, k)),
                pl.BlockSpec((tk, H), lambda i, k: (k, 0)),
                pl.BlockSpec((1, H), lambda i, k: (0, 0)),
                pl.BlockSpec((1, H), lambda i, k: (0, 0)),
                pl.BlockSpec((1, H), lambda i, k: (0, 0)),
            ],
            out_specs=pl.BlockSpec((tm, H), lambda i, k: (i, 0)),
            scratch_shapes=[pltpu.VMEM((tm, H), jnp.float32)],
        ),
        compiler_params=pltpu.CompilerParams(
            dimension_semantics=("parallel", "arbitrary"),
            vmem_limit_bytes=vmem_limit,
        ),
        cost_estimate=cost,
    )


def _round_up(a, m):
    return (a + m - 1) // m * m


def _vmem_capacity_bytes():
    try:
        info = pltpu.get_tpu_info()
        cap = getattr(info, "vmem_capacity_bytes", None)
        if cap:
            return int(cap)
    except Exception:
        pass
    return 64 << 20  # conservative default (v7x per-TensorCore)


def _single_pass_est(tm, H, xb, wb, ob):
    # double-buffered x/out tiles and (H,H) weight, f32 matmul result plus
    # GELU/LN full-tile temporaries, per-channel vectors.
    return (2 * H * H * wb + 2 * tm * H * xb + 2 * tm * H * ob
            + 3 * tm * H * 4 + 6 * H * 4)


def _k_tiled_est(tm, tk, H, xb, wb, ob):
    return (2 * tk * H * wb + 2 * tm * tk * xb + 2 * tm * H * ob
            + tm * H * 4 + 3 * tm * H * 4 + 6 * H * 4)


def _pick_tk(H):
    for tk in (512, 256, 128):
        if tk < H and H % tk == 0:
            return tk
    return None  # TODO(synk): K not a multiple of 128 falls back to single-pass


def _shrink_tm(tm, budget, est_fn):
    # Step down MXU-aligned (multiples of 256) first, then multiples of 8.
    while tm > 256 and est_fn(tm) > budget:
        tm = max(256, _round_up(tm // 2, 256))
    while tm > 8 and est_fn(tm) > budget:
        tm = max(8, _round_up(tm // 2, 8))
    return tm


def bert_prediction_head_transform(hidden_states, w, b, gamma, beta, *,
                                   tm=512, compute_dtype="auto",
                                   force_k_tiling=False, tk=None):
    """Fused dense -> gelu -> LayerNorm (BertPredictionHeadTransform.forward).

    hidden_states: [..., H]; w: [H, H] (nn.Linear layout, [out, in]);
    b / gamma / beta: [H].
    compute_dtype="auto": run the matmul with bf16 operands (f32 accumulation)
    when the input is f32; None keeps the input dtype; or pass an explicit dtype.
    """
    orig_shape = hidden_states.shape
    H = orig_shape[-1]
    out_dtype = hidden_states.dtype

    x2d = hidden_states.reshape(-1, H)
    M = x2d.shape[0]

    # Pre-transpose once in the wrapper: [out,in] -> [in,out] = [K,N] so the
    # kernel contracts the RHS on its first dim (no per-grid-step transpose).
    wt = jnp.transpose(w)

    if compute_dtype == "auto":
        compute_dtype = jnp.bfloat16 if x2d.dtype == jnp.float32 else None
    if compute_dtype is not None:
        x2d = x2d.astype(compute_dtype)
        wt = wt.astype(compute_dtype)

    b2 = b.reshape(1, H)
    g2 = gamma.reshape(1, H)
    bt2 = beta.reshape(1, H)

    xb = x2d.dtype.itemsize
    wb = wt.dtype.itemsize
    ob = jnp.dtype(out_dtype).itemsize

    cap = _vmem_capacity_bytes()
    budget = int(cap * 0.70)  # ~90 MiB on v5e/v6e (128 MiB), ~44 MiB on v7x (64 MiB)

    # Row tile: multiple of 8 sublanes, as large as the data / VMEM allow.
    tm_eff = min(_round_up(max(tm, 8), 8), _round_up(M, 8))
    # Give the megacore something to shard: at least 2 grid steps when there
    # is enough work.
    if M > 512 and pl.cdiv(M, tm_eff) < 2:
        tm_eff = max(256, _round_up(pl.cdiv(M, 2), 256))

    tk_eff = tk if tk is not None else _pick_tk(H)
    if tk_eff is not None and (tk_eff >= H or H % tk_eff != 0):
        tk_eff = _pick_tk(H)

    sp_est = lambda t: _single_pass_est(t, H, xb, wb, ob)
    use_k = bool(force_k_tiling and tk_eff is not None)
    if not use_k:
        t_try = _shrink_tm(tm_eff, budget, sp_est)
        if sp_est(t_try) <= budget and t_try >= min(256, tm_eff):
            tm_eff = t_try
        elif tk_eff is not None:
            # Prefer K-tiling over dropping tm below an MXU-friendly size.
            use_k = True
        else:
            tm_eff = t_try  # last resort; still correct

    if use_k:
        kt_est = lambda t: _k_tiled_est(t, tk_eff, H, xb, wb, ob)
        tm_eff = _shrink_tm(tm_eff, budget, kt_est)
        est = kt_est(tm_eff)
    else:
        est = sp_est(tm_eff)

    # Always set the scoped-VMEM limit explicitly (v5e's default is only 16 MiB).
    vmem_limit = int(min(max(est + (8 << 20), 32 << 20), cap - (4 << 20)))

    cost = pl.CostEstimate(
        flops=2 * M * H * H,
        transcendentals=M * H,
        bytes_accessed=M * H * (xb + ob) + H * H * wb + 3 * H * 4,
    )

    if use_k:
        call = _build_k_tiled(M, H, tm_eff, tk_eff, out_dtype, vmem_limit, cost)
    else:
        call = _build_single_pass(M, H, tm_eff, out_dtype, vmem_limit, cost)

    out = call(x2d, wt, b2, g2, bt2)
    return out.reshape(orig_shape)


if __name__ == "__main__":
    import numpy as np

    def ref_np(x, w, b, gamma, beta):
        x = np.asarray(x, np.float64)
        w = np.asarray(w, np.float64)
        b = np.asarray(b, np.float64)
        gamma = np.asarray(gamma, np.float64)
        beta = np.asarray(beta, np.float64)
        h = x @ w.T + b
        h = 0.5 * h * (1.0 + np.tanh(math.sqrt(2.0 / math.pi)
                                     * (h + 0.044715 * h ** 3)))
        u = h.mean(-1, keepdims=True)
        s = ((h - u) ** 2).mean(-1, keepdims=True)
        return gamma * ((h - u) / np.sqrt(s + 1e-12)) + beta

    key = jax.random.PRNGKey(0)
    k_x, k_w, k_b, k_x2, k_w2, k_b2 = jax.random.split(key, 6)

    # ---- Test 1: module-consistent small shapes (hidden=32), f32 matmul path,
    # ragged row count (M = 2*7 = 14 is not a multiple of the row tile).
    B, S, H = 2, 7, 32
    x = jax.random.normal(k_x, (B, S, H), dtype=jnp.float32)
    w = 0.1 * jax.random.normal(k_w, (H, H), dtype=jnp.float32)
    b = 0.05 * jax.random.normal(k_b, (H,), dtype=jnp.float32)
    gamma = jnp.ones((H,), jnp.float32)
    beta = jnp.zeros((H,), jnp.float32)

    out = bert_prediction_head_transform(x, w, b, gamma, beta, compute_dtype=None)
    out = jax.block_until_ready(out)
    gold = ref_np(x, w, b, gamma, beta)
    assert out.shape == x.shape and out.dtype == x.dtype
    err = float(np.max(np.abs(np.asarray(out, np.float64) - gold)))
    assert err < 5e-3, f"f32 path max error {err}"

    # ---- Test 2: default path (bf16 MXU operands, f32 accumulation + epilogue).
    out_bf = bert_prediction_head_transform(x, w, b, gamma, beta)
    out_bf = jax.block_until_ready(out_bf)
    assert out_bf.dtype == x.dtype
    err = float(np.max(np.abs(np.asarray(out_bf, np.float64) - gold)))
    assert err < 3e-2, f"bf16 path max error {err}"

    # ---- Test 3: K-tiled accumulator path (forced; trailing 'arbitrary' K axis).
    B2, S2, H2 = 2, 9, 256
    x2 = jax.random.normal(k_x2, (B2, S2, H2), dtype=jnp.float32)
    w2 = 0.05 * jax.random.normal(k_w2, (H2, H2), dtype=jnp.float32)
    b2 = 0.05 * jax.random.normal(k_b2, (H2,), dtype=jnp.float32)
    gamma2 = jnp.ones((H2,), jnp.float32)
    beta2 = jnp.zeros((H2,), jnp.float32)

    out2 = bert_prediction_head_transform(
        x2, w2, b2, gamma2, beta2, compute_dtype=None,
        force_k_tiling=True, tk=128)
    out2 = jax.block_until_ready(out2)
    gold2 = ref_np(x2, w2, b2, gamma2, beta2)
    assert out2.shape == x2.shape
    err = float(np.max(np.abs(np.asarray(out2, np.float64) - gold2)))
    assert err < 5e-3, f"k-tiled path max error {err}"

    print("KERNEL_OK")
</pallas_src>

<mosaic_0001>
module attributes {stable_mosaic.version = 11 : i64} {
  func.func @_transform_kernel(%arg0: i32, %arg1: memref<16x32xf32, #tpu.memory_space<vmem>>, %arg2: memref<32x32xf32, #tpu.memory_space<vmem>>, %arg3: memref<1x32xf32, #tpu.memory_space<vmem>>, %arg4: memref<1x32xf32, #tpu.memory_space<vmem>>, %arg5: memref<1x32xf32, #tpu.memory_space<vmem>>, %arg6: memref<16x32xf32, #tpu.memory_space<vmem>>) attributes {dimension_semantics = [#tpu.dimension_semantics<parallel>], iteration_bounds = array<i64: 1>, scalar_prefetch = 0 : i64, scratch_operands = 0 : i64, tpu.core_type = #tpu.core_type<tc>, window_params = [{transform_indices = @transform_0, window_bounds = array<i64: 16, 32>}, {pipeline_mode = #tpu.pipeline_mode<synchronous>, transform_indices = @transform_1, window_bounds = array<i64: 32, 32>}, {pipeline_mode = #tpu.pipeline_mode<synchronous>, transform_indices = @transform_2, window_bounds = array<i64: 1, 32>}, {pipeline_mode = #tpu.pipeline_mode<synchronous>, transform_indices = @transform_3, window_bounds = array<i64: 1, 32>}, {pipeline_mode = #tpu.pipeline_mode<synchronous>, transform_indices = @transform_4, window_bounds = array<i64: 1, 32>}, {transform_indices = @transform_5, window_bounds = array<i64: 16, 32>}]} {
    %c0 = arith.constant 0 : index
    %c0_0 = arith.constant 0 : index
    %0 = vector.load %arg1[%c0, %c0_0] : memref<16x32xf32, #tpu.memory_space<vmem>>, vector<16x32xf32>
    %c0_1 = arith.constant 0 : index
    %c0_2 = arith.constant 0 : index
    %1 = vector.load %arg2[%c0_1, %c0_2] : memref<32x32xf32, #tpu.memory_space<vmem>>, vector<32x32xf32>
    %cst = arith.constant dense<0.000000e+00> : vector<16x32xf32>
    %2 = tpu.matmul %0, %1, %cst {dimension_numbers = #tpu.dot_dimension_numbers<[1], [0], [0], [1], [0, 0, 1, 1], [], []>} : vector<16x32xf32>, vector<32x32xf32>, vector<16x32xf32> -> vector<16x32xf32>
    %c0_3 = arith.constant 0 : index
    %c0_4 = arith.constant 0 : index
    %3 = vector.load %arg3[%c0_3, %c0_4] : memref<1x32xf32, #tpu.memory_space<vmem>>, vector<1x32xf32>
    %4 = vector.broadcast %3 : vector<1x32xf32> to vector<16x32xf32>
    %5 = arith.addf %2, %4 : vector<16x32xf32>
    %c0_5 = arith.constant 0 : index
    %c0_6 = arith.constant 0 : index
    %6 = vector.load %arg4[%c0_5, %c0_6] : memref<1x32xf32, #tpu.memory_space<vmem>>, vector<1x32xf32>
    %c0_7 = arith.constant 0 : index
    %c0_8 = arith.constant 0 : index
    %7 = vector.load %arg5[%c0_7, %c0_8] : memref<1x32xf32, #tpu.memory_space<vmem>>, vector<1x32xf32>
    %8 = arith.mulf %5, %5 : vector<16x32xf32>
    %cst_9 = arith.constant 0.0356774069 : f32
    %9 = vector.broadcast %cst_9 : f32 to vector<16x32xf32>
    %10 = arith.mulf %9, %8 : vector<16x32xf32>
    %cst_10 = arith.constant 0.797884583 : f32
    %11 = vector.broadcast %cst_10 : f32 to vector<16x32xf32>
    %12 = arith.addf %11, %10 : vector<16x32xf32>
    %13 = arith.mulf %5, %12 : vector<16x32xf32>
    %cst_11 = arith.constant 5.000000e-01 : f32
    %14 = vector.broadcast %cst_11 : f32 to vector<16x32xf32>
    %15 = arith.mulf %14, %5 : vector<16x32xf32>
    %16 = math.tanh %13 : vector<16x32xf32>
    %cst_12 = arith.constant 1.000000e+00 : f32
    %17 = vector.broadcast %cst_12 : f32 to vector<16x32xf32>
    %18 = arith.addf %17, %16 : vector<16x32xf32>
    %19 = arith.mulf %15, %18 : vector<16x32xf32>
    %cst_13 = arith.constant dense<0.000000e+00> : vector<16xf32>
    %20 = vector.multi_reduction <add>, %19, %cst_13 [1] : vector<16x32xf32> to vector<16xf32>
    %21 = vector.shape_cast %20 : vector<16xf32> to vector<16x1xf32>
    %cst_14 = arith.constant 3.200000e+01 : f32
    %22 = vector.broadcast %cst_14 : f32 to vector<16x1xf32>
    %23 = arith.divf %21, %22 : vector<16x1xf32>
    %24 = vector.broadcast %23 : vector<16x1xf32> to vector<16x32xf32>
    %25 = arith.subf %19, %24 : vector<16x32xf32>
    %26 = arith.mulf %25, %25 : vector<16x32xf32>
    %cst_15 = arith.constant dense<0.000000e+00> : vector<16xf32>
    %27 = vector.multi_reduction <add>, %26, %cst_15 [1] : vector<16x32xf32> to vector<16xf32>
    %28 = vector.shape_cast %27 : vector<16xf32> to vector<16x1xf32>
    %cst_16 = arith.constant 3.200000e+01 : f32
    %29 = vector.broadcast %cst_16 : f32 to vector<16x1xf32>
    %30 = arith.divf %28, %29 : vector<16x1xf32>
    %cst_17 = arith.constant 9.99999996E-13 : f32
    %31 = vector.broadcast %cst_17 : f32 to vector<16x1xf32>
    %32 = arith.addf %30, %31 : vector<16x1xf32>
    %33 = math.rsqrt %32 : vector<16x1xf32>
    %34 = vector.broadcast %33 : vector<16x1xf32> to vector<16x32xf32>
    %35 = arith.mulf %25, %34 : vector<16x32xf32>
    %36 = vector.broadcast %6 : vector<1x32xf32> to vector<16x32xf32>
    %37 = arith.mulf %36, %35 : vector<16x32xf32>
    %38 = vector.broadcast %7 : vector<1x32xf32> to vector<16x32xf32>
    %39 = arith.addf %37, %38 : vector<16x32xf32>
    %c0_18 = arith.constant 0 : index
    %c0_19 = arith.constant 0 : index
    %40 = vector.load %arg6[%c0_18, %c0_19] : memref<16x32xf32, #tpu.memory_space<vmem>>, vector<16x32xf32>
    tpu.vector_store %arg6[%c0_18, %c0_19], %39 {strides = array<i32>} : memref<16x32xf32, #tpu.memory_space<vmem>>, vector<16x32xf32>,
    return
  }
  func.func @transform_0(%arg0: i32) -> (i32, i32) {
    %c0_i32 = arith.constant 0 : i32
    %c0_i32_0 = arith.constant 0 : i32
    return %arg0, %c0_i32 : i32, i32
  }
  func.func @transform_1(%arg0: i32) -> (i32, i32) {
    %c0_i32 = arith.constant 0 : i32
    %c0_i32_0 = arith.constant 0 : i32
    %c0_i32_1 = arith.constant 0 : i32
    return %c0_i32, %c0_i32_0 : i32, i32
  }
  func.func @transform_2(%arg0: i32) -> (i32, i32) {
    %c0_i32 = arith.constant 0 : i32
    %c0_i32_0 = arith.constant 0 : i32
    %c0_i32_1 = arith.constant 0 : i32
    return %c0_i32, %c0_i32_0 : i32, i32
  }
  func.func @transform_3(%arg0: i32) -> (i32, i32) {
    %c0_i32 = arith.constant 0 : i32
    %c0_i32_0 = arith.constant 0 : i32
    %c0_i32_1 = arith.constant 0 : i32
    return %c0_i32, %c0_i32_0 : i32, i32
  }
  func.func @transform_4(%arg0: i32) -> (i32, i32) {
    %c0_i32 = arith.constant 0 : i32
    %c0_i32_0 = arith.constant 0 : i32
    %c0_i32_1 = arith.constant 0 : i32
    return %c0_i32, %c0_i32_0 : i32, i32
  }
  func.func @transform_5(%arg0: i32) -> (i32, i32) {
    %c0_i32 = arith.constant 0 : i32
    %c0_i32_0 = arith.constant 0 : i32
    return %arg0, %c0_i32 : i32, i32
  }
}

</mosaic_0001>

<llo_original>
// kernel: tpu_custom_call.1
$region0: #{tpu_custom_call.1}
  #allocation0 [shape = 'u32[]', space=smem, size = 0x4, offset = 0x4, fixed_abs, tag = 'smem constant byte address 0x4 - core index']
  #allocation1 [shape = 'u32[144,128]{1,0:T(1,128)}', space=vmem, size = 0x12000, scoped, tag = 'internal scratch']
  %s0 = inlined_call_operand.hbm [shape: f32[14,32], index: 0, kind: input, shape index: {}]
  %s1 = inlined_call_operand.hbm [shape: f32[32,32], index: 1, kind: input, shape index: {}]
  %s2 = inlined_call_operand.vmem [shape: f32[1,32], index: 2, kind: input, shape index: {}]
  %s3 = inlined_call_operand.vmem [shape: f32[1,32], index: 3, kind: input, shape index: {}]
  %s4 = inlined_call_operand.vmem [shape: f32[1,32], index: 4, kind: input, shape index: {}]
  %s5 = inlined_call_operand.hbm [shape: f32[14,32], index: 5, kind: output, shape index: {}]
  %s6 = sld [smem:[#allocation0]]
  $region38: #{tpu_custom_call.1} parent=0
    _
  %s8 = ssub.s32 1, %s6
  %s9 = scalar_select 0, %s8, %s6
  $region1: #{tpu_custom_call.1} parent=0
    #allocation2 [shape = 'u8[8192]{0}', space=vmem, size = 0x2000, scoped, tag = 'input window, operand 0, single buffered']
    #allocation3 [shape = 's32[1]{0}', space=sflag, size = 0x4, scoped, tag = 'scoped memory for tpu_custom_call.1']
    #allocation4 [shape = 's32[1]{0}', space=sflag, size = 0x4, scoped, tag = 'scoped memory for tpu_custom_call.1']
    #allocation5 [shape = 'u8[16384]{0}', space=vmem, size = 0x4000, scoped, tag = 'input window, operand 1, single buffered']
    #allocation6 [shape = 's32[1]{0}', space=sflag, size = 0x4, scoped, tag = 'scoped memory for tpu_custom_call.1']
    #allocation7 [shape = 'u8[8192]{0}', space=vmem, size = 0x2000, scoped, tag = 'output window, operand 0, single buffered']
    %10 = vsyncpa [#allocation3], 0
    %11 = vsyncpa [#allocation6], 0
    %12 = vsyncpa [#allocation4], 0
    // Predicated region
    $region2: #{tpu_custom_call.1} parent=1 // pred_check
      _
    $region3: #{tpu_custom_call.1} parent=1 // pred_check_branch
      %14 = sbr.rel (0) target = $region5
    $region4: #{tpu_custom_call.1} parent=1 // pred_region
      %s16 = ssub.s32 256, 256
      %17 = vsyncadd [#allocation3], %s16
      %s18 = sshll.u32 [#allocation2], 4
      %s19 = int_to_ptr.vmem [resolvable:$true] %s18
      %24 = dma.hbm_to_vmem [thread:$0]  %s0, 256, %s19, [#allocation3], 128, 128, 8
    $region5: #{tpu_custom_call.1} parent=1 // pred_fallthru
      _
    // Predicated region
    $region6: #{tpu_custom_call.1} parent=1 // pred_check
      _
    $region7: #{tpu_custom_call.1} parent=1 // pred_check_branch
      %26 = sbr.rel (0) target = $region9
    $region8: #{tpu_custom_call.1} parent=1 // pred_region
      %s28 = ssub.s32 512, 512
      %29 = vsyncadd [#allocation6], %s28
      %s30 = sshll.u32 [#allocation5], 4
      %s31 = int_to_ptr.vmem [resolvable:$true] %s30
      %36 = dma.hbm_to_vmem [thread:$0]  %s1, 512, %s31, [#allocation6], 128, 128, 8
    $region9: #{tpu_custom_call.1} parent=1 // pred_fallthru
      _
    // Predicated region
    $region10: #{tpu_custom_call.1} parent=1 // pred_check
      _
    $region11: #{tpu_custom_call.1} parent=1 // pred_check_branch
      %38 = sbr.rel (0) target = $region13
    $region12: #{tpu_custom_call.1} parent=1 // pred_region
      _
    $region13: #{tpu_custom_call.1} parent=1 // pred_fallthru
      _
    // Predicated region
    $region14: #{tpu_custom_call.1} parent=1 // pred_check
      _
    $region15: #{tpu_custom_call.1} parent=1 // pred_check_branch
      %40 = sbr.rel (0) target = $region17
    $region16: #{tpu_custom_call.1} parent=1 // pred_region
      _
    $region17: #{tpu_custom_call.1} parent=1 // pred_fallthru
      _
    // Predicated region
    $region18: #{tpu_custom_call.1} parent=1 // pred_check
      _
    $region19: #{tpu_custom_call.1} parent=1 // pred_check_branch
      %42 = sbr.rel (0) target = $region21
    $region20: #{tpu_custom_call.1} parent=1 // pred_region
      _
    $region21: #{tpu_custom_call.1} parent=1 // pred_fallthru
      _
    // Predicated region
    $region22: #{tpu_custom_call.1} parent=1 // pred_check
      _
    $region23: #{tpu_custom_call.1} parent=1 // pred_check_branch
      %44 = sbr.rel (0) target = $region25
    $region24: #{tpu_custom_call.1} parent=1 // pred_region
      %45 = dma.done [#allocation3], 256
    $region25: #{tpu_custom_call.1} parent=1 // pred_fallthru
      _
    // Predicated region
    $region26: #{tpu_custom_call.1} parent=1 // pred_check
      _
    $region27: #{tpu_custom_call.1} parent=1 // pred_check_branch
      %47 = sbr.rel (0) target = $region29
    $region28: #{tpu_custom_call.1} parent=1 // pred_region
      %48 = dma.done [#allocation6], 512
    $region29: #{tpu_custom_call.1} parent=1 // pred_fallthru
      _
    %v49 = vld [vmem:[#allocation2] sm:$0xff]
    %v50 = vld [vmem:[#allocation2 + $0x8] sm:$0xff]
    %v51 = vld [vmem:[#allocation5] sm:$0xff]
    %v52 = vld [vmem:[#allocation5 + $0x8] sm:$0xff]
    %v53 = vld [vmem:[#allocation5 + $0x10] sm:$0xff]
    %v54 = vld [vmem:[#allocation5 + $0x18] sm:$0xff]
    %v55 = vld [vmem:[%s2] sm:$0x1]
    %v57 = vlaneseq
    %v58 = vshrl.u32 %v57, 7
    %v59 = vsub.s32 0, %v58
    %v60 = vrot.slane %v55, %v59
    %vm62 = vcmask 261120
    %v64 = vsel %vm62, %v49, 0
    %v67 = vsel %vm62, %v50, 0
    %69 = vmatprep.subr.mxu0 0.0
    %70 = vmatpush1.msra.mxu0 %v51
    %71 = vmatprep.subr.mxu0 0.0
    %72 = vmatpush1.msra.mxu0 %v52
    %73 = vmatprep.subr.mxu0 0.0
    %74 = vmatpush1.msra.mxu0 %v53
    %75 = vmatprep.subr.mxu0 0.0
    %76 = vmatpush1.msra.mxu0 %v54
    %77 = vmatprep.subr.mxu0 0.0
    %78 = vmatpush1.msra.mxu0 0.0
    %79 = vmatprep.subr.mxu0 0.0
    %80 = vmatpush1.msra.mxu0 0.0
    %81 = vmatprep.subr.mxu0 0.0
    %82 = vmatpush1.msra.mxu0 0.0
    %83 = vmatprep.subr.mxu0 0.0
    %84 = vmatpush1.msra.mxu0 0.0
    %85 = vmatprep.subr.mxu0 0.0
    %86 = vmatpush1.msra.mxu0 0.0
    %87 = vmatprep.subr.mxu0 0.0
    %88 = vmatpush1.msra.mxu0 0.0
    %89 = vmatprep.subr.mxu0 0.0
    %90 = vmatpush1.msra.mxu0 0.0
    %91 = vmatprep.subr.mxu0 0.0
    %92 = vmatpush1.msra.mxu0 0.0
    %93 = vmatprep.subr.mxu0 0.0
    %94 = vmatpush1.msra.mxu0 0.0
    %95 = vmatprep.subr.mxu0 0.0
    %96 = vmatpush1.msra.mxu0 0.0
    %97 = vmatprep.subr.mxu0 0.0
    %98 = vmatpush1.msra.mxu0 0.0
    %99 = vmatprep.subr.mxu0 0.0
    %100 = vmatpush1.msra.mxu0 0.0
    %101 = vmatprep.subr.mxu0 0.0
    %102 = vmatpush1.msra.mxu0 0.0
    %103 = vmatprep.subr.mxu0 0.0
    %104 = vmatpush1.msra.mxu0 0.0
    %105 = vmatprep.subr.mxu0 0.0
    %106 = vmatpush1.msra.mxu0 0.0
    %107 = vmatprep.subr.mxu0 0.0
    %108 = vmatpush1.msra.mxu0 0.0
    %109 = vmatprep.subr.mxu0 0.0
    %110 = vmatpush1.msra.mxu0 0.0
    %111 = vmatprep.subr.mxu0 0.0
    %112 = vmatpush1.msra.mxu0 0.0
    %113 = vmatprep.subr.mxu0 0.0
    %114 = vmatpush1.msra.mxu0 0.0
    %115 = vmatprep.subr.mxu0 0.0
    %116 = vmatpush1.msra.mxu0 0.0
    %117 = vmatprep.subr.mxu0 0.0
    %118 = vmatpush1.msra.mxu0 0.0
    %119 = vmatprep.subr.mxu0 0.0
    %120 = vmatpush1.msra.mxu0 0.0
    %121 = vmatprep.subr.mxu0 0.0
    %122 = vmatpush1.msra.mxu0 0.0
    %123 = vmatprep.subr.mxu0 0.0
    %124 = vmatpush1.msra.mxu0 0.0
    %125 = vmatprep.subr.mxu0 0.0
    %126 = vmatpush1.msra.mxu0 0.0
    %127 = vmatprep.subr.mxu0 0.0
    %128 = vmatpush1.msra.mxu0 0.0
    %129 = vmatprep.subr.mxu0 0.0
    %130 = vmatpush1.msra.mxu0 0.0
    %131 = vmatprep.subr.mxu0 0.0
    %132 = vmatpush1.msra.mxu0 0.0
    %133 = vmatprep.mubr.f32.mxu0 0.0
    %134 = vmatmul.mubr.f32.gmra.mrb[0].mxu0 %v64
    %v135 = vpop.f32.mrb[0].mxu0
    %v136 = vadd.f32 %v60, %v135
    %v137 = vpop.f32.mrb[0].mxu0
    %138 = vmatprep.mubr.f32.mxu0 0.0
    %139 = vmatmul.mubr.f32.gmra.mrb[0].mxu0 %v67
    %v140 = vpop.f32.mrb[0].mxu0
    %v141 = vadd.f32 %v60, %v140
    %v142 = vpop.f32.mrb[0].mxu0
    %143 = vdwg.mxu0
    %v144 = vld [vmem:[%s3] sm:$0x1]
    %v145 = vld [vmem:[%s4] sm:$0x1]
    %v146 = vmul.f32 %v136, %v136
    %v147 = vmul.f32 %v141, %v141
    %v148 = vmul.f32 %v146, 0.035677407
    %v149 = vmul.f32 %v147, 0.035677407
    %v150 = vadd.f32 %v148, 0.7978846
    %v151 = vadd.f32 %v149, 0.7978846
    %v152 = vmul.f32 %v136, %v150
    %v153 = vmul.f32 %v141, %v151
    %v154 = vmul.f32 %v136, 0.5
    %v155 = vmul.f32 %v141, 0.5
    %v156 = vtanh.pop %v152
    %v157 = vtanh.pop %v153
    %v158 = vadd.f32 %v156, 1.0
    %v159 = vadd.f32 %v157, 1.0
    %v160 = vmul.f32 %v154, %v158
    %v161 = vmul.f32 %v155, %v159
    %v162 = vsel %vm62, %v160, 0.0
    %163 = vadd.xlane.f32.xlu0 %v162
    %v164 = vpop.xlane.xlu0 %163
    %v165 = vsel %vm62, %v161, 0.0
    %166 = vadd.xlane.f32.xlu0 %v165
    %v167 = vpop.xlane.xlu0 %166
    %v168 = vrcp.pop 32.0
    %v169 = vmul.f32 %v164, %v168
    %v170 = vmul.f32 %v167, %v168
    %v171 = vsub.f32 %v160, %v169
    %v172 = vsub.f32 %v161, %v170
    %v173 = vmul.f32 %v171, %v171
    %v174 = vmul.f32 %v172, %v172
    %v175 = vsel %vm62, %v173, 0.0
    %176 = vadd.xlane.f32.xlu0 %v175
    %v177 = vpop.xlane.xlu0 %176
    %v178 = vsel %vm62, %v174, 0.0
    %179 = vadd.xlane.f32.xlu0 %v178
    %v180 = vpop.xlane.xlu0 %179
    %v181 = vmul.f32 %v177, %v168
    %v182 = vmul.f32 %v180, %v168
    %v183 = vadd.f32 %v181, 1e-12
    %v184 = vadd.f32 %v182, 1e-12
    %v185 = vrsqrt.pop %v183
    %v186 = vrsqrt.pop %v184
    %v187 = vmul.f32 %v171, %v185
    %v188 = vmul.f32 %v172, %v186
    %v190 = vlaneseq
    %v191 = vshrl.u32 %v190, 7
    %v192 = vsub.s32 0, %v191
    %v193 = vrot.slane %v144, %v192
    %v195 = vmul.f32 %v193, %v187
    %v196 = vmul.f32 %v193, %v188
    %v198 = vlaneseq
    %v199 = vshrl.u32 %v198, 7
    %v200 = vsub.s32 0, %v199
    %v201 = vrot.slane %v145, %v200
    %v203 = vadd.f32 %v195, %v201
    %v204 = vadd.f32 %v196, %v201
    %205 = vst.msk [vmem:[#allocation7] sm:$0xff] %vm62, %v203
    %206 = vst.msk [vmem:[#allocation7 + $0x8] sm:$0xff] %vm62, %v204
    // Predicated region
    $region30: #{tpu_custom_call.1} parent=1 // pred_check
      _
    $region31: #{tpu_custom_call.1} parent=1 // pred_check_branch
      %208 = sbr.rel (0) target = $region33
    $region32: #{tpu_custom_call.1} parent=1 // pred_region
      %s210 = ssub.s32 256, 256
      %211 = vsyncadd [#allocation4], %s210
      %s212 = sshll.u32 [#allocation7], 4
      %s213 = int_to_ptr.vmem [resolvable:$true] %s212
      %218 = dma.vmem_to_hbm [thread:$0]  %s213, 256, %s5, [#allocation4], 128, 128, 8
    $region33: #{tpu_custom_call.1} parent=1 // pred_fallthru
      _
    // Predicated region
    $region34: #{tpu_custom_call.1} parent=1 // pred_check
      _
    $region35: #{tpu_custom_call.1} parent=1 // pred_check_branch
      %220 = sbr.rel (0) target = $region37
    $region36: #{tpu_custom_call.1} parent=1 // pred_region
      %221 = dma.done [#allocation4], 256
    $region37: #{tpu_custom_call.1} parent=1 // pred_fallthru
      _
    %222 = vsyncpa [#allocation3], 1
    %223 = vsyncpa [#allocation6], 1
    %224 = vsyncpa [#allocation4], 1

</llo_original>
